<compile_context>
chip_gen: v6e
topology: v6e:2x2x1
jax: 0.10.0
libtpu: 0.0.40
codegen_flags: <defaults>
</compile_context>

<pallas_src>
import math
import functools

import jax
import jax.numpy as jnp
from jax.experimental import pallas as pl
from jax.experimental.pallas import tpu as pltpu


def make_ffn_kernel(eps: float, compute_dtype):
    def kernel(x_ref, g_ref, b_ref, w1_ref, b1_ref, w2_ref, b2_ref, o_ref):
        x = x_ref[...]                                   # (bm, N) f32, residual source

        # ---- LayerNorm over the feature dim (biased variance, matches torch) ----
        mu = jnp.mean(x, axis=-1, keepdims=True)
        xc = x - mu
        var = jnp.mean(xc * xc, axis=-1, keepdims=True)
        xn = xc * jax.lax.rsqrt(var + eps)
        xn = xn * g_ref[...] + b_ref[...]

        # ---- w_1: (bm, N) @ (N, H) on the MXU (bf16 operands, f32 accumulate) ----
        h = jnp.dot(xn.astype(compute_dtype), w1_ref[...],
                    preferred_element_type=jnp.float32) + b1_ref[...]

        # ---- Swish in f32 (sigmoid goes to the EUP slot) ----
        h = h * jax.nn.sigmoid(h)

        # TODO(synk): dropout1/dropout2 are identity (eval mode); training-mode
        # dropout would need pltpu.prng_seed / prng_random_bits masking.

        # ---- w_2: (bm, H) @ (H, N) on the MXU ----
        y = jnp.dot(h.astype(compute_dtype), w2_ref[...],
                    preferred_element_type=jnp.float32) + b2_ref[...]

        # ---- scaled residual ----
        o_ref[...] = x + 0.5 * y

    return kernel


def _vmem_budget_bytes(block_rows: int, n: int, h: int, weight_bytes: int) -> int:
    """Rough explicit VMEM budget (resident weights + pipelined tiles + working set)."""
    resident = 2 * n * h * weight_bytes + (3 * n + h) * 4     # w1, w2, ln_g/b, b1, b2
    pipelined = 2 * 2 * block_rows * n * 4                    # x + out tiles, double-buffered
    working = 3 * block_rows * (n + h) * 4                    # LN temps, h, bf16 casts
    est = 2 * (resident + pipelined + working) + (4 << 20)    # 2x + 4 MiB headroom
    # Floor at the default 32 MiB scoped limit, cap below v7x's 64 MiB physical VMEM.
    return int(min(max(est, 32 << 20), 60 << 20))


def positionwise_ffn_forward(x, params, *, eps: float = 1e-5,
                             compute_dtype=jnp.bfloat16, block_rows: int = 256):
    """x: (B, T, N) float32. params: torch-layout LayerNorm + 2 Linear params."""
    B, T, N = x.shape
    H = params["w1"].shape[0]
    M = B * T

    bm = min(block_rows, M)
    bm = max(8, (bm // 8) * 8)                 # sublane-aligned row tile
    grid = (pl.cdiv(M, bm),)

    xf = x.reshape(M, N).astype(jnp.float32)

    # Weights pre-transposed to (in, out) and cast to the MXU compute dtype;
    # biases / LN params kept f32 and reshaped to (1, dim) for broadcasting.
    w1 = params["w1"].T.astype(compute_dtype)              # (N, H)
    w2 = params["w2"].T.astype(compute_dtype)              # (H, N)
    ln_g = params["ln_g"].reshape(1, N).astype(jnp.float32)
    ln_b = params["ln_b"].reshape(1, N).astype(jnp.float32)
    b1 = params["b1"].reshape(1, H).astype(jnp.float32)
    b2 = params["b2"].reshape(1, N).astype(jnp.float32)

    row_spec = pl.BlockSpec((bm, N), lambda i: (i, 0))
    # Grid-invariant operands: whole-array resident in VMEM, single-buffered,
    # no per-grid-step DMA (instead of the default double-buffered BlockSpec).
    resident = pl.BlockSpec(memory_space=pltpu.MemorySpace.VMEM)

    kernel = make_ffn_kernel(eps, compute_dtype)
    vmem_limit = _vmem_budget_bytes(bm, N, H, jnp.dtype(compute_dtype).itemsize)

    out = pl.pallas_call(
        kernel,
        out_shape=jax.ShapeDtypeStruct((M, N), jnp.float32),
        grid_spec=pltpu.PrefetchScalarGridSpec(
            num_scalar_prefetch=0,
            grid=grid,
            in_specs=[
                row_spec,               # x row tile
                resident, resident,     # ln gamma, beta
                resident, resident,     # w1, b1
                resident, resident,     # w2, b2
            ],
            out_specs=row_spec,
        ),
        compiler_params=pltpu.CompilerParams(
            dimension_semantics=("parallel",),
            vmem_limit_bytes=vmem_limit),
    )(xf, ln_g, ln_b, w1, b1, w2, b2)

    return out.reshape(B, T, N)


def reference_forward(x, params, eps: float = 1e-5):
    """Pure-JAX reference mirroring the PyTorch module (eval mode), full f32."""
    dot = functools.partial(jnp.dot, precision=jax.lax.Precision.HIGHEST)
    res = x
    mu = jnp.mean(x, axis=-1, keepdims=True)
    var = jnp.mean((x - mu) ** 2, axis=-1, keepdims=True)
    xn = (x - mu) / jnp.sqrt(var + eps)
    xn = xn * params["ln_g"] + params["ln_b"]
    h = dot(xn, params["w1"].T) + params["b1"]
    h = h * jax.nn.sigmoid(h)                      # Swish
    y = dot(h, params["w2"].T) + params["b2"]
    return res + 0.5 * y


if __name__ == "__main__":
    # Small, lane-dense shapes: N and H multiples of 128 so stores are unmasked
    # and matmul tiles are (8,128)-aligned.
    B, T, N, H = 2, 16, 128, 256
    key = jax.random.PRNGKey(0)
    keys = jax.random.split(key, 7)

    params = {
        "ln_g": 1.0 + 0.05 * jax.random.normal(keys[0], (N,), jnp.float32),
        "ln_b": 0.05 * jax.random.normal(keys[1], (N,), jnp.float32),
        # torch layout: w1 (H, N), w2 (N, H)
        "w1": jax.random.normal(keys[2], (H, N), jnp.float32) / math.sqrt(N),
        "b1": 0.1 * jax.random.normal(keys[3], (H,), jnp.float32),
        "w2": jax.random.normal(keys[4], (N, H), jnp.float32) / math.sqrt(H),
        "b2": 0.1 * jax.random.normal(keys[5], (N,), jnp.float32),
    }
    x = jax.random.normal(keys[6], (B, T, N), jnp.float32)

    ref = reference_forward(x, params)

    # Optimized path: bf16 MXU matmuls, f32 accumulation. block_rows=8 just to
    # exercise a multi-step parallel grid at toy sizes (production: >=256).
    out_bf16 = jax.block_until_ready(
        positionwise_ffn_forward(x, params, compute_dtype=jnp.bfloat16, block_rows=8))
    assert out_bf16.shape == (B, T, N)
    assert jnp.allclose(out_bf16, ref, atol=5e-2, rtol=5e-2), "bf16 kernel mismatch vs reference"

    # Full-f32 compute path (same kernel, compute_dtype knob).
    out_f32 = jax.block_until_ready(
        positionwise_ffn_forward(x, params, compute_dtype=jnp.float32, block_rows=8))
    assert jnp.allclose(out_f32, ref, atol=5e-2, rtol=5e-2), "f32 kernel mismatch vs reference"

    print("KERNEL_OK")
</pallas_src>

<mosaic_0001>
module attributes {stable_mosaic.version = 11 : i64} {
  func.func @kernel(%arg0: i32, %arg1: memref<8x128xf32, #tpu.memory_space<vmem>>, %arg2: memref<1x128xf32, #tpu.memory_space<vmem>>, %arg3: memref<1x128xf32, #tpu.memory_space<vmem>>, %arg4: memref<128x256xbf16, #tpu.memory_space<vmem>>, %arg5: memref<1x256xf32, #tpu.memory_space<vmem>>, %arg6: memref<256x128xbf16, #tpu.memory_space<vmem>>, %arg7: memref<1x128xf32, #tpu.memory_space<vmem>>, %arg8: memref<8x128xf32, #tpu.memory_space<vmem>>) attributes {dimension_semantics = [#tpu.dimension_semantics<parallel>], iteration_bounds = array<i64: 4>, scalar_prefetch = 0 : i64, scratch_operands = 0 : i64, tpu.core_type = #tpu.core_type<tc>, window_params = [{transform_indices = @transform_0, window_bounds = array<i64: 8, 128>}, {pipeline_mode = #tpu.pipeline_mode<synchronous>, transform_indices = @transform_1, window_bounds = array<i64: 1, 128>}, {pipeline_mode = #tpu.pipeline_mode<synchronous>, transform_indices = @transform_2, window_bounds = array<i64: 1, 128>}, {pipeline_mode = #tpu.pipeline_mode<synchronous>, transform_indices = @transform_3, window_bounds = array<i64: 128, 256>}, {pipeline_mode = #tpu.pipeline_mode<synchronous>, transform_indices = @transform_4, window_bounds = array<i64: 1, 256>}, {pipeline_mode = #tpu.pipeline_mode<synchronous>, transform_indices = @transform_5, window_bounds = array<i64: 256, 128>}, {pipeline_mode = #tpu.pipeline_mode<synchronous>, transform_indices = @transform_6, window_bounds = array<i64: 1, 128>}, {transform_indices = @transform_7, window_bounds = array<i64: 8, 128>}]} {
    %c0 = arith.constant 0 : index
    %c0_0 = arith.constant 0 : index
    %0 = vector.load %arg1[%c0, %c0_0] : memref<8x128xf32, #tpu.memory_space<vmem>>, vector<8x128xf32>
    %cst = arith.constant dense<0.000000e+00> : vector<8xf32>
    %1 = vector.multi_reduction <add>, %0, %cst [1] : vector<8x128xf32> to vector<8xf32>
    %2 = vector.shape_cast %1 : vector<8xf32> to vector<8x1xf32>
    %cst_1 = arith.constant 1.280000e+02 : f32
    %3 = vector.broadcast %cst_1 : f32 to vector<8x1xf32>
    %4 = arith.divf %2, %3 : vector<8x1xf32>
    %5 = vector.broadcast %4 : vector<8x1xf32> to vector<8x128xf32>
    %6 = arith.subf %0, %5 : vector<8x128xf32>
    %7 = arith.mulf %6, %6 : vector<8x128xf32>
    %cst_2 = arith.constant dense<0.000000e+00> : vector<8xf32>
    %8 = vector.multi_reduction <add>, %7, %cst_2 [1] : vector<8x128xf32> to vector<8xf32>
    %9 = vector.shape_cast %8 : vector<8xf32> to vector<8x1xf32>
    %cst_3 = arith.constant 1.280000e+02 : f32
    %10 = vector.broadcast %cst_3 : f32 to vector<8x1xf32>
    %11 = arith.divf %9, %10 : vector<8x1xf32>
    %cst_4 = arith.constant 9.99999974E-6 : f32
    %12 = vector.broadcast %cst_4 : f32 to vector<8x1xf32>
    %13 = arith.addf %11, %12 : vector<8x1xf32>
    %14 = math.rsqrt %13 : vector<8x1xf32>
    %15 = vector.broadcast %14 : vector<8x1xf32> to vector<8x128xf32>
    %16 = arith.mulf %6, %15 : vector<8x128xf32>
    %c0_5 = arith.constant 0 : index
    %c0_6 = arith.constant 0 : index
    %17 = vector.load %arg2[%c0_5, %c0_6] : memref<1x128xf32, #tpu.memory_space<vmem>>, vector<1x128xf32>
    %18 = vector.broadcast %17 : vector<1x128xf32> to vector<8x128xf32>
    %19 = arith.mulf %16, %18 : vector<8x128xf32>
    %c0_7 = arith.constant 0 : index
    %c0_8 = arith.constant 0 : index
    %20 = vector.load %arg3[%c0_7, %c0_8] : memref<1x128xf32, #tpu.memory_space<vmem>>, vector<1x128xf32>
    %21 = vector.broadcast %20 : vector<1x128xf32> to vector<8x128xf32>
    %22 = arith.addf %19, %21 : vector<8x128xf32>
    %23 = arith.truncf %22 : vector<8x128xf32> to vector<8x128xbf16>
    %c0_9 = arith.constant 0 : index
    %c0_10 = arith.constant 0 : index
    %24 = vector.load %arg4[%c0_9, %c0_10] : memref<128x256xbf16, #tpu.memory_space<vmem>>, vector<128x256xbf16>
    %cst_11 = arith.constant dense<0.000000e+00> : vector<8x256xf32>
    %25 = tpu.matmul %23, %24, %cst_11 {dimension_numbers = #tpu.dot_dimension_numbers<[1], [0], [0], [1], [0, 0, 1, 1], [], []>} : vector<8x128xbf16>, vector<128x256xbf16>, vector<8x256xf32> -> vector<8x256xf32>
    %c0_12 = arith.constant 0 : index
    %c0_13 = arith.constant 0 : index
    %26 = vector.load %arg5[%c0_12, %c0_13] : memref<1x256xf32, #tpu.memory_space<vmem>>, vector<1x256xf32>
    %27 = vector.broadcast %26 : vector<1x256xf32> to vector<8x256xf32>
    %28 = arith.addf %25, %27 : vector<8x256xf32>
    %29 = arith.negf %28 : vector<8x256xf32>
    %30 = math.exp %29 : vector<8x256xf32>
    %cst_14 = arith.constant 1.000000e+00 : f32
    %31 = vector.broadcast %cst_14 : f32 to vector<8x256xf32>
    %32 = arith.addf %31, %30 : vector<8x256xf32>
    %33 = arith.divf %31, %32 : vector<8x256xf32>
    %34 = arith.mulf %28, %33 : vector<8x256xf32>
    %35 = arith.truncf %34 : vector<8x256xf32> to vector<8x256xbf16>
    %c0_15 = arith.constant 0 : index
    %c0_16 = arith.constant 0 : index
    %36 = vector.load %arg6[%c0_15, %c0_16] : memref<256x128xbf16, #tpu.memory_space<vmem>>, vector<256x128xbf16>
    %cst_17 = arith.constant dense<0.000000e+00> : vector<8x128xf32>
    %37 = tpu.matmul %35, %36, %cst_17 {dimension_numbers = #tpu.dot_dimension_numbers<[1], [0], [0], [1], [0, 0, 1, 1], [], []>} : vector<8x256xbf16>, vector<256x128xbf16>, vector<8x128xf32> -> vector<8x128xf32>
    %c0_18 = arith.constant 0 : index
    %c0_19 = arith.constant 0 : index
    %38 = vector.load %arg7[%c0_18, %c0_19] : memref<1x128xf32, #tpu.memory_space<vmem>>, vector<1x128xf32>
    %39 = vector.broadcast %38 : vector<1x128xf32> to vector<8x128xf32>
    %40 = arith.addf %37, %39 : vector<8x128xf32>
    %cst_20 = arith.constant 5.000000e-01 : f32
    %41 = vector.broadcast %cst_20 : f32 to vector<8x128xf32>
    %42 = arith.mulf %41, %40 : vector<8x128xf32>
    %43 = arith.addf %0, %42 : vector<8x128xf32>
    %c0_21 = arith.constant 0 : index
    %c0_22 = arith.constant 0 : index
    %44 = vector.load %arg8[%c0_21, %c0_22] : memref<8x128xf32, #tpu.memory_space<vmem>>, vector<8x128xf32>
    tpu.vector_store %arg8[%c0_21, %c0_22], %43 {strides = array<i32>} : memref<8x128xf32, #tpu.memory_space<vmem>>, vector<8x128xf32>,
    return
  }
  func.func @transform_0(%arg0: i32) -> (i32, i32) {
    %c0_i32 = arith.constant 0 : i32
    %c0_i32_0 = arith.constant 0 : i32
    return %arg0, %c0_i32 : i32, i32
  }
  func.func @transform_1(%arg0: i32) -> (i32, i32) {
    %c0_i32 = arith.constant 0 : i32
    %c0_i32_0 = arith.constant 0 : i32
    %c0_i32_1 = arith.constant 0 : i32
    return %c0_i32, %c0_i32_0 : i32, i32
  }
  func.func @transform_2(%arg0: i32) -> (i32, i32) {
    %c0_i32 = arith.constant 0 : i32
    %c0_i32_0 = arith.constant 0 : i32
    %c0_i32_1 = arith.constant 0 : i32
    return %c0_i32, %c0_i32_0 : i32, i32
  }
  func.func @transform_3(%arg0: i32) -> (i32, i32) {
    %c0_i32 = arith.constant 0 : i32
    %c0_i32_0 = arith.constant 0 : i32
    %c0_i32_1 = arith.constant 0 : i32
    return %c0_i32, %c0_i32_0 : i32, i32
  }
  func.func @transform_4(%arg0: i32) -> (i32, i32) {
    %c0_i32 = arith.constant 0 : i32
    %c0_i32_0 = arith.constant 0 : i32
    %c0_i32_1 = arith.constant 0 : i32
    return %c0_i32, %c0_i32_0 : i32, i32
  }
  func.func @transform_5(%arg0: i32) -> (i32, i32) {
    %c0_i32 = arith.constant 0 : i32
    %c0_i32_0 = arith.constant 0 : i32
    %c0_i32_1 = arith.constant 0 : i32
    return %c0_i32, %c0_i32_0 : i32, i32
  }
  func.func @transform_6(%arg0: i32) -> (i32, i32) {
    %c0_i32 = arith.constant 0 : i32
    %c0_i32_0 = arith.constant 0 : i32
    %c0_i32_1 = arith.constant 0 : i32
    return %c0_i32, %c0_i32_0 : i32, i32
  }
  func.func @transform_7(%arg0: i32) -> (i32, i32) {
    %c0_i32 = arith.constant 0 : i32
    %c0_i32_0 = arith.constant 0 : i32
    return %arg0, %c0_i32 : i32, i32
  }
}

</mosaic_0001>

<llo_original>
// kernel: tpu_custom_call.1
$region0: #{tpu_custom_call.1}
  #allocation0 [shape = 'u32[]', space=smem, size = 0x4, offset = 0x4, fixed_abs, tag = 'smem constant byte address 0x4 - core index']
  #allocation1 [shape = 'u32[144,128]{1,0:T(1,128)}', space=vmem, size = 0x12000, scoped, tag = 'internal scratch']
  %s0 = inlined_call_operand.hbm [shape: f32[32,128], index: 0, kind: input, shape index: {}]
  %s1 = inlined_call_operand.vmem [shape: f32[1,128], index: 1, kind: input, shape index: {}]
  %s2 = inlined_call_operand.hbm [shape: f32[1,128], index: 2, kind: input, shape index: {}]
  %s3 = inlined_call_operand.hbm [shape: bf16[128,256], index: 3, kind: input, shape index: {}]
  %s4 = inlined_call_operand.vmem [shape: f32[1,256], index: 4, kind: input, shape index: {}]
  %s5 = inlined_call_operand.hbm [shape: bf16[256,128], index: 5, kind: input, shape index: {}]
  %s6 = inlined_call_operand.vmem [shape: f32[1,128], index: 6, kind: input, shape index: {}]
  %s7 = inlined_call_operand.hbm [shape: f32[32,128], index: 7, kind: output, shape index: {}]
  %s8 = sld [smem:[#allocation0]]
  $region77: #{tpu_custom_call.1} parent=0
    _
  %s10 = ssub.s32 1, %s8
  %s11 = scalar_select 0, %s10, %s8
  $region1: #{tpu_custom_call.1} parent=0
    #allocation2 [shape = 'u8[8192]{0}', space=vmem, size = 0x2000, scoped, tag = 'input window, operand 0']
    #allocation3 [shape = 's32[2]{0}', space=sflag, size = 0x8, scoped, tag = 'scoped memory for tpu_custom_call.1']
    #allocation4 [shape = 's32[2]{0}', space=sflag, size = 0x8, scoped, tag = 'scoped memory for tpu_custom_call.1']
    #allocation5 [shape = 'u8[512]{0}', space=vmem, size = 0x400, scoped, tag = 'input window, operand 2, single buffered']
    #allocation6 [shape = 's32[1]{0}', space=sflag, size = 0x4, scoped, tag = 'scoped memory for tpu_custom_call.1']
    #allocation7 [shape = 'u8[65536]{0}', space=vmem, size = 0x10000, scoped, tag = 'input window, operand 3, single buffered']
    #allocation8 [shape = 'u8[65536]{0}', space=vmem, size = 0x10000, scoped, tag = 'input window, operand 5, single buffered']
    #allocation9 [shape = 's32[1]{0}', space=sflag, size = 0x4, scoped, tag = 'scoped memory for tpu_custom_call.1']
    #allocation10 [shape = 'u8[8192]{0}', space=vmem, size = 0x2000, scoped, tag = 'output window, operand 0']
    %12 = vsyncpa [#allocation3], 0
    %s13 = scalar_lea.sflag [#allocation3], 1
    %14 = vsyncpa %s13, 0
    %15 = vsyncpa [#allocation6], 0
    %16 = vsyncpa [#allocation9], 0
    %17 = vsyncpa [#allocation4], 0
    %s18 = scalar_lea.sflag [#allocation4], 1
    %19 = vsyncpa %s18, 0
    loop: start=0, step=1, limit=6
    $region2: #{tpu_custom_call.1} parent=1 // loop_pre_header
      _
    $region3: #{tpu_custom_call.1} parent=1 // loop_header
      %s21 = sphi 0, %s25
      %p22 = scmp.ge.s32.totalorder %s21, 6
      %s31 = sphi 0, %s33
      %s34 = sphi 0, %s31
      %s35 = sphi 0, %s34
      %s51 = sphi 0, %s35
      %s55 = sphi 0, %s55
      %s57 = sphi 0, %s55
      %s58 = sphi 0, %s57
      %s72 = sphi 0, %s58
      %s76 = sphi 0, %s76
      %s78 = sphi 0, %s76
      %s79 = sphi 0, %s78
      %s93 = sphi 0, %s79
      %s97 = sphi 0, %s97
      %s99 = sphi 0, %s97
      %s100 = sphi 0, %s99
      %s114 = sphi 0, %s100
      %s118 = sphi 0, %s118
      %s120 = sphi 0, %s118
      %s121 = sphi 0, %s120
      %s135 = sphi 0, %s121
      %s139 = sphi 0, %s139
      %s141 = sphi 0, %s139
      %s142 = sphi 0, %s141
      %s156 = sphi 0, %s142
      %s160 = sphi 0, %s160
      %s162 = sphi 0, %s160
      %s163 = sphi 0, %s162
      %s177 = sphi 0, %s163
      %s183 = sphi 0, %s185
      %s186 = sphi 0, %s183
      %s187 = sphi 0, %s186
      %s203 = sphi 0, %s187
    $region4: #{tpu_custom_call.1} parent=1 // loop_header_branch
      %24 = sbr.rel (%p22) target = $region8
    $region5: #{tpu_custom_call.1} parent=1 // loop_body
      %s26 = ssub.s32 %s21, 1
      %s27 = ssub.s32 %s21, 2
      %s28 = sadd.s32 %s21, 1
      %s29 = ssub.s32 %s21, %s28
      %p30 = scmp.eq.s32.totalorder %s29, 0
      %s32 = sadd.s32 %s31, 1
      %s33 = scalar_select %p30, %s31, %s32
      %p36 = pneg %p30
      %p37 = scmp.eq.s32.totalorder %s21, 3
      %p38 = por %p36, %p37
      %p39 = scmp.ne.s32.totalorder %s31, %s34
      %p40 = scmp.eq.s32.totalorder %s21, 0
      %p41 = por %p39, %p40
      %p42 = scmp.ne.s32.totalorder %s31, %s34
      %p43 = scmp.eq.s32.totalorder %s26, 3
      %p44 = por %p42, %p43
      %p45 = scmp.ne.s32.totalorder %s34, %s35
      %p46 = scmp.eq.s32.totalorder %s26, 0
      %p47 = por %p45, %p46
      %p48 = scmp.ne.s32.totalorder %s34, %s35
      %p49 = scmp.eq.s32.totalorder %s27, 3
      %p50 = por %p48, %p49
      %p52 = scmp.ne.s32.totalorder %s35, %s51
      %p53 = scmp.eq.s32.totalorder %s27, 0
      %p54 = por %p52, %p53
      %s56 = sadd.s32 %s55, 1
      %p59 = scmp.eq.s32.totalorder %s21, 3
      %p60 = scmp.ne.s32.totalorder %s55, %s57
      %p61 = scmp.eq.s32.totalorder %s21, 0
      %p62 = por %p60, %p61
      %p63 = scmp.ne.s32.totalorder %s55, %s57
      %p64 = scmp.eq.s32.totalorder %s26, 3
      %p65 = por %p63, %p64
      %p66 = scmp.ne.s32.totalorder %s57, %s58
      %p67 = scmp.eq.s32.totalorder %s26, 0
      %p68 = por %p66, %p67
      %p69 = scmp.ne.s32.totalorder %s57, %s58
      %p70 = scmp.eq.s32.totalorder %s27, 3
      %p71 = por %p69, %p70
      %p73 = scmp.ne.s32.totalorder %s58, %s72
      %p74 = scmp.eq.s32.totalorder %s27, 0
      %p75 = por %p73, %p74
      %s77 = sadd.s32 %s76, 1
      %p80 = scmp.eq.s32.totalorder %s21, 3
      %p81 = scmp.ne.s32.totalorder %s76, %s78
      %p82 = scmp.eq.s32.totalorder %s21, 0
      %p83 = por %p81, %p82
      %p84 = scmp.ne.s32.totalorder %s76, %s78
      %p85 = scmp.eq.s32.totalorder %s26, 3
      %p86 = por %p84, %p85
      %p87 = scmp.ne.s32.totalorder %s78, %s79
      %p88 = scmp.eq.s32.totalorder %s26, 0
      %p89 = por %p87, %p88
      %p90 = scmp.ne.s32.totalorder %s78, %s79
      %p91 = scmp.eq.s32.totalorder %s27, 3
      %p92 = por %p90, %p91
      %p94 = scmp.ne.s32.totalorder %s79, %s93
      %p95 = scmp.eq.s32.totalorder %s27, 0
      %p96 = por %p94, %p95
      %s98 = sadd.s32 %s97, 1
      %p101 = scmp.eq.s32.totalorder %s21, 3
      %p102 = scmp.ne.s32.totalorder %s97, %s99
      %p103 = scmp.eq.s32.totalorder %s21, 0
      %p104 = por %p102, %p103
      %p105 = scmp.ne.s32.totalorder %s97, %s99
      %p106 = scmp.eq.s32.totalorder %s26, 3
      %p107 = por %p105, %p106
      %p108 = scmp.ne.s32.totalorder %s99, %s100
      %p109 = scmp.eq.s32.totalorder %s26, 0
      %p110 = por %p108, %p109
      %p111 = scmp.ne.s32.totalorder %s99, %s100
      %p112 = scmp.eq.s32.totalorder %s27, 3
      %p113 = por %p111, %p112
      %p115 = scmp.ne.s32.totalorder %s100, %s114
      %p116 = scmp.eq.s32.totalorder %s27, 0
      %p117 = por %p115, %p116
      %s119 = sadd.s32 %s118, 1
      %p122 = scmp.eq.s32.totalorder %s21, 3
      %p123 = scmp.ne.s32.totalorder %s118, %s120
      %p124 = scmp.eq.s32.totalorder %s21, 0
      %p125 = por %p123, %p124
      %p126 = scmp.ne.s32.totalorder %s118, %s120
      %p127 = scmp.eq.s32.totalorder %s26, 3
      %p128 = por %p126, %p127
      %p129 = scmp.ne.s32.totalorder %s120, %s121
      %p130 = scmp.eq.s32.totalorder %s26, 0
      %p131 = por %p129, %p130
      %p132 = scmp.ne.s32.totalorder %s120, %s121
      %p133 = scmp.eq.s32.totalorder %s27, 3
      %p134 = por %p132, %p133
      %p136 = scmp.ne.s32.totalorder %s121, %s135
      %p137 = scmp.eq.s32.totalorder %s27, 0
      %p138 = por %p136, %p137
      %s140 = sadd.s32 %s139, 1
      %p143 = scmp.eq.s32.totalorder %s21, 3
      %p144 = scmp.ne.s32.totalorder %s139, %s141
      %p145 = scmp.eq.s32.totalorder %s21, 0
      %p146 = por %p144, %p145
      %p147 = scmp.ne.s32.totalorder %s139, %s141
      %p148 = scmp.eq.s32.totalorder %s26, 3
      %p149 = por %p147, %p148
      %p150 = scmp.ne.s32.totalorder %s141, %s142
      %p151 = scmp.eq.s32.totalorder %s26, 0
      %p152 = por %p150, %p151
      %p153 = scmp.ne.s32.totalorder %s141, %s142
      %p154 = scmp.eq.s32.totalorder %s27, 3
      %p155 = por %p153, %p154
      %p157 = scmp.ne.s32.totalorder %s142, %s156
      %p158 = scmp.eq.s32.totalorder %s27, 0
      %p159 = por %p157, %p158
      %s161 = sadd.s32 %s160, 1
      %p164 = scmp.eq.s32.totalorder %s21, 3
      %p165 = scmp.ne.s32.totalorder %s160, %s162
      %p166 = scmp.eq.s32.totalorder %s21, 0
      %p167 = por %p165, %p166
      %p168 = scmp.ne.s32.totalorder %s160, %s162
      %p169 = scmp.eq.s32.totalorder %s26, 3
      %p170 = por %p168, %p169
      %p171 = scmp.ne.s32.totalorder %s162, %s163
      %p172 = scmp.eq.s32.totalorder %s26, 0
      %p173 = por %p171, %p172
      %p174 = scmp.ne.s32.totalorder %s162, %s163
      %p175 = scmp.eq.s32.totalorder %s27, 3
      %p176 = por %p174, %p175
      %p178 = scmp.ne.s32.totalorder %s163, %s177
      %p179 = scmp.eq.s32.totalorder %s27, 0
      %p180 = por %p178, %p179
      %s181 = ssub.s32 %s21, %s28
      %p182 = scmp.eq.s32.totalorder %s181, 0
      %s184 = sadd.s32 %s183, 1
      %s185 = scalar_select %p182, %s183, %s184
      %p188 = pneg %p182
      %p189 = scmp.eq.s32.totalorder %s21, 3
      %p190 = por %p188, %p189
      %p191 = scmp.ne.s32.totalorder %s183, %s186
      %p192 = scmp.eq.s32.totalorder %s21, 0
      %p193 = por %p191, %p192
      %p194 = scmp.ne.s32.totalorder %s183, %s186
      %p195 = scmp.eq.s32.totalorder %s26, 3
      %p196 = por %p194, %p195
      %p197 = scmp.ne.s32.totalorder %s186, %s187
      %p198 = scmp.eq.s32.totalorder %s26, 0
      %p199 = por %p197, %p198
      %p200 = scmp.ne.s32.totalorder %s186, %s187
      %p201 = scmp.eq.s32.totalorder %s27, 3
      %p202 = por %p200, %p201
      %p204 = scmp.ne.s32.totalorder %s187, %s203
      %p205 = scmp.eq.s32.totalorder %s27, 0
      %p206 = por %p204, %p205
      %p207 = scmp.le.s32.totalorder 1, %s21
      %p208 = scmp.lt.s32.totalorder %s21, 5
      %p209 = pnand %p207, %p208
      %p210 = pneg %p209
      // Predicated region
      $region9: #{tpu_custom_call.1} parent=5 // pred_check
        _
      $region10: #{tpu_custom_call.1} parent=5 // pred_check_branch
        %212 = sbr.rel (%p209) target = $region12
      $region11: #{tpu_custom_call.1} parent=5 // pred_region
        %s213 = ssub.s32 %s21, 1
        // Predicated region
        $region13: #{tpu_custom_call.1} parent=11 // pred_check
          %p214 = pneg %p68
        $region14: #{tpu_custom_call.1} parent=11 // pred_check_branch
          %216 = sbr.rel (%p214) target = $region16
        $region15: #{tpu_custom_call.1} parent=11 // pred_region
          _
        $region16: #{tpu_custom_call.1} parent=11 // pred_fallthru
          _
        // Predicated region
        $region17: #{tpu_custom_call.1} parent=11 // pred_check
          %p217 = pneg %p89
        $region18: #{tpu_custom_call.1} parent=11 // pred_check_branch
          %219 = sbr.rel (%p217) target = $region20
        $region19: #{tpu_custom_call.1} parent=11 // pred_region
          %s221 = ssub.s32 16, 16
          %222 = vsyncadd [#allocation6], %s221
          %s224 = sshll.u32 [#allocation5], 4
          %s225 = int_to_ptr.vmem [resolvable:$true] %s224
          %227 = dma.hbm_to_vmem [thread:$0]  %s2, 16, %s225, [#allocation6]
        $region20: #{tpu_custom_call.1} parent=11 // pred_fallthru
          _
        // Predicated region
        $region21: #{tpu_custom_call.1} parent=11 // pred_check
          %p228 = pneg %p110
        $region22: #{tpu_custom_call.1} parent=11 // pred_check_branch
          %230 = sbr.rel (%p228) target = $region24
        $region23: #{tpu_custom_call.1} parent=11 // pred_region
          %s232 = ssub.s32 2048, 2048
          %233 = vsyncadd [#allocation6], %s232
          %s234 = sshll.u32 [#allocation7], 4
          %s235 = int_to_ptr.vmem [resolvable:$true] %s234
          %240 = dma.hbm_to_vmem [thread:$0]  %s3, 2048, %s235, [#allocation6], 128, 128, 8
        $region24: #{tpu_custom_call.1} parent=11 // pred_fallthru
          _
        // Predicated region
        $region25: #{tpu_custom_call.1} parent=11 // pred_check
          %p241 = pneg %p131
        $region26: #{tpu_custom_call.1} parent=11 // pred_check_branch
          %243 = sbr.rel (%p241) target = $region28
        $region27: #{tpu_custom_call.1} parent=11 // pred_region
          _
        $region28: #{tpu_custom_call.1} parent=11 // pred_fallthru
          _
        // Predicated region
        $region29: #{tpu_custom_call.1} parent=11 // pred_check
          %p244 = pneg %p152
        $region30: #{tpu_custom_call.1} parent=11 // pred_check_branch
          %246 = sbr.rel (%p244) target = $region32
        $region31: #{tpu_custom_call.1} parent=11 // pred_region
          %s248 = ssub.s32 2048, 2048
          %249 = vsyncadd [#allocation9], %s248
          %s250 = sshll.u32 [#allocation8], 4
          %s251 = int_to_ptr.vmem [resolvable:$true] %s250
          %256 = dma.hbm_to_vmem [thread:$0]  %s5, 2048, %s251, [#allocation9], 64, 64, 4
        $region32: #{tpu_custom_call.1} parent=11 // pred_fallthru
          _
        // Predicated region
        $region33: #{tpu_custom_call.1} parent=11 // pred_check
          %p257 = pneg %p173
        $region34: #{tpu_custom_call.1} parent=11 // pred_check_branch
          %259 = sbr.rel (%p257) target = $region36
        $region35: #{tpu_custom_call.1} parent=11 // pred_region
          _
        $region36: #{tpu_custom_call.1} parent=11 // pred_fallthru
          _
      $region12: #{tpu_custom_call.1} parent=5 // pred_fallthru
        _
      %p260 = scmp.lt.s32.totalorder %s21, 4
      // Predicated region
      $region37: #{tpu_custom_call.1} parent=5 // pred_check
        %p261 = pneg %p260
      $region38: #{tpu_custom_call.1} parent=5 // pred_check_branch
        %263 = sbr.rel (%p261) target = $region40
      $region39: #{tpu_custom_call.1} parent=5 // pred_region
        // Predicated region
        $region41: #{tpu_custom_call.1} parent=39 // pred_check
          %p264 = pneg %p41
        $region42: #{tpu_custom_call.1} parent=39 // pred_check_branch
          %266 = sbr.rel (%p264) target = $region44
        $region43: #{tpu_custom_call.1} parent=39 // pred_region
          %s267 = sand.u32 %s31, 1
          %s268 = scalar_lea.sflag [#allocation3], %s267
          %s269 = sand.u32 %s31, 1
          %s270 = smul.addr %s269, 8
          %s271 = scalar_lea.vmem [#allocation2], %s270
          %s273 = ssub.s32 128, 128
          %274 = vsyncadd %s268, %s273
          %s275 = smul.addr %s21, 128
          %s276 = scalar_lea.hbm %s0, %s275
          %s278 = sshll.u32 %s271, 4
          %s279 = int_to_ptr.vmem [resolvable:$true] %s278
          %281 = dma.hbm_to_vmem [thread:$0]  %s276, 128, %s279, %s268
        $region44: #{tpu_custom_call.1} parent=39 // pred_fallthru
          _
      $region40: #{tpu_custom_call.1} parent=5 // pred_fallthru
        _
      %p282 = scmp.le.s32.totalorder 1, %s21
      %p283 = scmp.lt.s32.totalorder %s21, 5
      %p284 = pnand %p282, %p283
      %p285 = pneg %p284
      // Predicated region
      $region45: #{tpu_custom_call.1} parent=5 // pred_check
        _
      $region46: #{tpu_custom_call.1} parent=5 // pred_check_branch
        %287 = sbr.rel (%p284) target = $region48
      $region47: #{tpu_custom_call.1} parent=5 // pred_region
        %s288 = ssub.s32 %s21, 1
        %s289 = sand.u32 %s34, 1
        %s290 = scalar_lea.sflag [#allocation3], %s289
        %s291 = sand.u32 %s34, 1
        %s292 = smul.addr %s291, 8
        %s293 = scalar_lea.vmem [#allocation2], %s292
        // Predicated region
        $region49: #{tpu_custom_call.1} parent=47 // pred_check
          %p294 = pneg %p47
        $region50: #{tpu_custom_call.1} parent=47 // pred_check_branch
          %296 = sbr.rel (%p294) target = $region52
        $region51: #{tpu_custom_call.1} parent=47 // pred_region
          %297 = dma.done %s290, 128
        $region52: #{tpu_custom_call.1} parent=47 // pred_fallthru
          _
        // Predicated region
        $region53: #{tpu_custom_call.1} parent=47 // pred_check
          %p298 = pneg %p89
        $region54: #{tpu_custom_call.1} parent=47 // pred_check_branch
          %300 = sbr.rel (%p298) target = $region56
        $region55: #{tpu_custom_call.1} parent=47 // pred_region
          %301 = dma.done [#allocation6], 16
        $region56: #{tpu_custom_call.1} parent=47 // pred_fallthru
          _
        // Predicated region
        $region57: #{tpu_custom_call.1} parent=47 // pred_check
          %p302 = pneg %p110
        $region58: #{tpu_custom_call.1} parent=47 // pred_check_branch
          %304 = sbr.rel (%p302) target = $region60
        $region59: #{tpu_custom_call.1} parent=47 // pred_region
          %305 = dma.done [#allocation6], 2048
        $region60: #{tpu_custom_call.1} parent=47 // pred_fallthru
          _
        // Predicated region
        $region61: #{tpu_custom_call.1} parent=47 // pred_check
          %p306 = pneg %p152
        $region62: #{tpu_custom_call.1} parent=47 // pred_check_branch
          %308 = sbr.rel (%p306) target = $region64
        $region63: #{tpu_custom_call.1} parent=47 // pred_region
          %309 = dma.done [#allocation9], 2048
        $region64: #{tpu_custom_call.1} parent=47 // pred_fallthru
          _
        %s310 = sand.u32 %s34, 1
        %s311 = scalar_lea.sflag [#allocation3], %s310
        %s312 = sand.u32 %s34, 1
        %s313 = smul.addr %s312, 8
        %s314 = scalar_lea.vmem [#allocation2], %s313
        %p315 = pneg %p47
        %p316 = pneg %p44
        %p317 = pneg %p68
        %p318 = pneg %p65
        %p319 = pneg %p89
        %p320 = pneg %p86
        %p321 = pneg %p110
        %p322 = pneg %p107
        %p323 = pneg %p131
        %p324 = pneg %p128
        %p325 = pneg %p152
        %p326 = pneg %p149
        %p327 = pneg %p173
        %p328 = pneg %p170
        %p329 = pneg %p199
        %p330 = pneg %p196
        %s331 = sand.u32 %s186, 1
        %s332 = scalar_lea.sflag [#allocation4], %s331
        %s333 = sand.u32 %s186, 1
        %s334 = smul.addr %s333, 8
        %s335 = scalar_lea.vmem [#allocation10], %s334
        %v337 = vld [vmem:[%s293] sm:$0xff]
        %338 = vadd.xlane.f32.xlu0 %v337
        %v339 = vpop.xlane.xlu0 %338
        %v340 = vrcp.pop 128.0
        %v341 = vmul.f32 %v339, %v340
        %v342 = vsub.f32 %v337, %v341
        %v343 = vmul.f32 %v342, %v342
        %344 = vadd.xlane.f32.xlu0 %v343
        %v345 = vpop.xlane.xlu0 %344
        %v346 = vmul.f32 %v345, %v340
        %v347 = vadd.f32 %v346, 1e-05
        %v348 = vrsqrt.pop %v347
        %v349 = vmul.f32 %v342, %v348
        %v350 = vld [vmem:[%s1] sm:$0x1]
        %v352 = vlaneseq
        %v353 = vshrl.u32 %v352, 7
        %v354 = vsub.s32 0, %v353
        %v355 = vrot.slane %v350, %v354
        %v357 = vmul.f32 %v349, %v355
        %v358 = vld [vmem:[#allocation5] sm:$0x1]
        %v360 = vlaneseq
        %v361 = vshrl.u32 %v360, 7
        %v362 = vsub.s32 0, %v361
        %v363 = vrot.slane %v358, %v362
        %v365 = vadd.f32 %v357, %v363
        %v366 = vpack.c.bf16 %v365, %v365
        %v367 = vld [vmem:[#allocation7] sm:$0xff]
        %v368 = vld [vmem:[#allocation7 + $0x8] sm:$0xff]
        %v369 = vld [vmem:[#allocation7 + $0x10] sm:$0xff]
        %v370 = vld [vmem:[#allocation7 + $0x18] sm:$0xff]
        %v371 = vld [vmem:[#allocation7 + $0x20] sm:$0xff]
        %v372 = vld [vmem:[#allocation7 + $0x28] sm:$0xff]
        %v373 = vld [vmem:[#allocation7 + $0x30] sm:$0xff]
        %v374 = vld [vmem:[#allocation7 + $0x38] sm:$0xff]
        %v375 = vld [vmem:[#allocation7 + $0x40] sm:$0xff]
        %v376 = vld [vmem:[#allocation7 + $0x48] sm:$0xff]
        %v377 = vld [vmem:[#allocation7 + $0x50] sm:$0xff]
        %v378 = vld [vmem:[#allocation7 + $0x58] sm:$0xff]
        %v379 = vld [vmem:[#allocation7 + $0x60] sm:$0xff]
        %v380 = vld [vmem:[#allocation7 + $0x68] sm:$0xff]
        %v381 = vld [vmem:[#allocation7 + $0x70] sm:$0xff]
        %v382 = vld [vmem:[#allocation7 + $0x78] sm:$0xff]
        %v383 = vld [vmem:[%s4] sm:$0x3]
        %v385 = vlaneseq
        %v386 = vshrl.u32 %v385, 7
        %v387 = vsub.s32 0, %v386
        %v388 = vrot.slane %v383, %v387
        %v389 = vlaneseq
        %v390 = vshrl.u32 %v389, 7
        %v391 = vsub.s32 1, %v390
        %v392 = vrot.slane %v383, %v391
        %v411 = vunpack.c.l.b16 %v367
        %v412 = vunpack.c.h.b16 %v367
        %v413 = vunpack.c.l.b16 %v368
        %v414 = vunpack.c.h.b16 %v368
        %v415 = vunpack.c.l.b16 %v369
        %v416 = vunpack.c.h.b16 %v369
        %v417 = vunpack.c.l.b16 %v370
        %v418 = vunpack.c.h.b16 %v370
        %v419 = vunpack.c.l.b16 %v371
        %v420 = vunpack.c.h.b16 %v371
        %v421 = vunpack.c.l.b16 %v372
        %v422 = vunpack.c.h.b16 %v372
        %v423 = vunpack.c.l.b16 %v373
        %v424 = vunpack.c.h.b16 %v373
        %v425 = vunpack.c.l.b16 %v374
        %v426 = vunpack.c.h.b16 %v374
        %v427 = vunpack.c.l.b16 %v375
        %v428 = vunpack.c.h.b16 %v375
        %v429 = vunpack.c.l.b16 %v376
        %v430 = vunpack.c.h.b16 %v376
        %v431 = vunpack.c.l.b16 %v377
        %v432 = vunpack.c.h.b16 %v377
        %v433 = vunpack.c.l.b16 %v378
        %v434 = vunpack.c.h.b16 %v378
        %v435 = vunpack.c.l.b16 %v379
        %v436 = vunpack.c.h.b16 %v379
        %v437 = vunpack.c.l.b16 %v380
        %v438 = vunpack.c.h.b16 %v380
        %v439 = vunpack.c.l.b16 %v381
        %v440 = vunpack.c.h.b16 %v381
        %v441 = vunpack.c.l.b16 %v382
        %v442 = vunpack.c.h.b16 %v382
        %v443 = vpack.c.b16 %v413, %v411
        %v444 = vpack.c.b16 %v414, %v412
        %v445 = vpack.c.b16 %v417, %v415
        %v446 = vpack.c.b16 %v418, %v416
        %v447 = vpack.c.b16 %v421, %v419
        %v448 = vpack.c.b16 %v422, %v420
        %v449 = vpack.c.b16 %v425, %v423
        %v450 = vpack.c.b16 %v426, %v424
        %v451 = vpack.c.b16 %v429, %v427
        %v452 = vpack.c.b16 %v430, %v428
        %v453 = vpack.c.b16 %v433, %v431
        %v454 = vpack.c.b16 %v434, %v432
        %v455 = vpack.c.b16 %v437, %v435
        %v456 = vpack.c.b16 %v438, %v436
        %v457 = vpack.c.b16 %v441, %v439
        %v458 = vpack.c.b16 %v442, %v440
        %475 = vmatprep.subr.bf16.mxu0 %v458
        %476 = vmatpush1.bf16.msra.mxu0 %v457
        %477 = vmatprep.subr.bf16.mxu0 %v456
        %478 = vmatpush1.bf16.msra.mxu0 %v455
        %479 = vmatprep.subr.bf16.mxu0 %v454
        %480 = vmatpush1.bf16.msra.mxu0 %v453
        %481 = vmatprep.subr.bf16.mxu0 %v452
        %482 = vmatpush1.bf16.msra.mxu0 %v451
        %483 = vmatprep.subr.bf16.mxu0 %v450
        %484 = vmatpush1.bf16.msra.mxu0 %v449
        %485 = vmatprep.subr.bf16.mxu0 %v448
        %486 = vmatpush1.bf16.msra.mxu0 %v447
        %487 = vmatprep.subr.bf16.mxu0 %v446
        %488 = vmatpush1.bf16.msra.mxu0 %v445
        %489 = vmatprep.subr.bf16.mxu0 %v444
        %490 = vmatpush1.bf16.msra.mxu0 %v443
        %491 = vmatprep.subr.bf16.mxu0 0
        %492 = vmatpush2.bf16.msra.mxu0 0
        %493 = vmatprep.subr.bf16.mxu0 0
        %494 = vmatpush2.bf16.msra.mxu0 0
        %495 = vmatprep.subr.bf16.mxu0 0
        %496 = vmatpush2.bf16.msra.mxu0 0
        %497 = vmatprep.subr.bf16.mxu0 0
        %498 = vmatpush2.bf16.msra.mxu0 0
        %499 = vmatprep.subr.bf16.mxu0 0
        %500 = vmatpush2.bf16.msra.mxu0 0
        %501 = vmatprep.subr.bf16.mxu0 0
        %502 = vmatpush2.bf16.msra.mxu0 0
        %503 = vmatprep.subr.bf16.mxu0 0
        %504 = vmatpush2.bf16.msra.mxu0 0
        %505 = vmatprep.subr.bf16.mxu0 0
        %506 = vmatpush2.bf16.msra.mxu0 0
        %507 = vmatprep.mubr.bf16.mxu0 0
        %508 = vmatmul.mubr.bf16.gmra.mxu0 %v366
        %v509 = vpop.f32.mrf.mxu0
        %v510 = vadd.f32 %v388, %v509
        %v511 = vpop.f32.mrf.mxu0
        %v512 = vadd.f32 %v392, %v511
        %v513 = vpop.f32.mrf.mxu0
        %v514 = vpop.f32.mrf.mxu0
        %515 = vdwg.mxu0
        %v516 = vxor.u32 %v510, 2147483648
        %v517 = vxor.u32 %v512, 2147483648
        %v518 = vmul.f32 %v516, 1.442695
        %v519 = vpow.pop %v518
        %v520 = vmul.f32 %v517, 1.442695
        %v521 = vpow.pop %v520
        %v522 = vadd.f32 %v519, 1.0
        %v523 = vadd.f32 %v521, 1.0
        %v524 = vrcp.pop %v522
        %v525 = vmul.f32 1.0, %v524
        %v526 = vrcp.pop %v523
        %v527 = vmul.f32 1.0, %v526
        %v528 = vmul.f32 %v510, %v525
        %v529 = vmul.f32 %v512, %v527
        %v530 = vpack.c.bf16 %v528, %v528
        %v531 = vpack.c.bf16 %v529, %v529
        %v532 = vld [vmem:[#allocation8] sm:$0xf]
        %v533 = vld [vmem:[#allocation8 + $0x4] sm:$0xf]
        %v534 = vld [vmem:[#allocation8 + $0x8] sm:$0xf]
        %v535 = vld [vmem:[#allocation8 + $0xc] sm:$0xf]
        %v536 = vld [vmem:[#allocation8 + $0x10] sm:$0xf]
        %v537 = vld [vmem:[#allocation8 + $0x14] sm:$0xf]
        %v538 = vld [vmem:[#allocation8 + $0x18] sm:$0xf]
        %v539 = vld [vmem:[#allocation8 + $0x1c] sm:$0xf]
        %v540 = vld [vmem:[#allocation8 + $0x20] sm:$0xf]
        %v541 = vld [vmem:[#allocation8 + $0x24] sm:$0xf]
        %v542 = vld [vmem:[#allocation8 + $0x28] sm:$0xf]
        %v543 = vld [vmem:[#allocation8 + $0x2c] sm:$0xf]
        %v544 = vld [vmem:[#allocation8 + $0x30] sm:$0xf]
        %v545 = vld [vmem:[#allocation8 + $0x34] sm:$0xf]
        %v546 = vld [vmem:[#allocation8 + $0x38] sm:$0xf]
        %v547 = vld [vmem:[#allocation8 + $0x3c] sm:$0xf]
        %v548 = vld [vmem:[#allocation8 + $0x40] sm:$0xf]
        %v549 = vld [vmem:[#allocation8 + $0x44] sm:$0xf]
        %v550 = vld [vmem:[#allocation8 + $0x48] sm:$0xf]
        %v551 = vld [vmem:[#allocation8 + $0x4c] sm:$0xf]
        %v552 = vld [vmem:[#allocation8 + $0x50] sm:$0xf]
        %v553 = vld [vmem:[#allocation8 + $0x54] sm:$0xf]
        %v554 = vld [vmem:[#allocation8 + $0x58] sm:$0xf]
        %v555 = vld [vmem:[#allocation8 + $0x5c] sm:$0xf]
        %v556 = vld [vmem:[#allocation8 + $0x60] sm:$0xf]
        %v557 = vld [vmem:[#allocation8 + $0x64] sm:$0xf]
        %v558 = vld [vmem:[#allocation8 + $0x68] sm:$0xf]
        %v559 = vld [vmem:[#allocation8 + $0x6c] sm:$0xf]
        %v560 = vld [vmem:[#allocation8 + $0x70] sm:$0xf]
        %v561 = vld [vmem:[#allocation8 + $0x74] sm:$0xf]
        %v562 = vld [vmem:[#allocation8 + $0x78] sm:$0xf]
        %v563 = vld [vmem:[#allocation8 + $0x7c] sm:$0xf]
        %v564 = vld [vmem:[%s6] sm:$0x1]
        %v566 = vlaneseq
        %v567 = vshrl.u32 %v566, 7
        %v568 = vsub.s32 0, %v567
        %v569 = vrot.slane %v564, %v568
        %v603 = vunpack.c.l.b16 %v532
        %v604 = vunpack.c.l.b16 %v533
        %v605 = vunpack.c.l.b16 %v534
        %v606 = vunpack.c.l.b16 %v535
        %v607 = vunpack.c.l.b16 %v536
        %v608 = vunpack.c.l.b16 %v537
        %v609 = vunpack.c.l.b16 %v538
        %v610 = vunpack.c.l.b16 %v539
        %v611 = vunpack.c.l.b16 %v540
        %v612 = vunpack.c.l.b16 %v541
        %v613 = vunpack.c.l.b16 %v542
        %v614 = vunpack.c.l.b16 %v543
        %v615 = vunpack.c.l.b16 %v544
        %v616 = vunpack.c.l.b16 %v545
        %v617 = vunpack.c.l.b16 %v546
        %v618 = vunpack.c.l.b16 %v547
        %v619 = vunpack.c.l.b16 %v548
        %v620 = vunpack.c.l.b16 %v549
        %v621 = vunpack.c.l.b16 %v550
        %v622 = vunpack.c.l.b16 %v551
        %v623 = vunpack.c.l.b16 %v552
        %v624 = vunpack.c.l.b16 %v553
        %v625 = vunpack.c.l.b16 %v554
        %v626 = vunpack.c.l.b16 %v555
        %v627 = vunpack.c.l.b16 %v556
        %v628 = vunpack.c.l.b16 %v557
        %v629 = vunpack.c.l.b16 %v558
        %v630 = vunpack.c.l.b16 %v559
        %v631 = vunpack.c.l.b16 %v560
        %v632 = vunpack.c.l.b16 %v561
        %v633 = vunpack.c.l.b16 %v562
        %v634 = vunpack.c.l.b16 %v563
        %v635 = vpack.c.b16 %v604, %v603
        %v636 = vpack.c.b16 %v606, %v605
        %v637 = vpack.c.b16 %v608, %v607
        %v638 = vpack.c.b16 %v610, %v609
        %v639 = vpack.c.b16 %v612, %v611
        %v640 = vpack.c.b16 %v614, %v613
        %v641 = vpack.c.b16 %v616, %v615
        %v642 = vpack.c.b16 %v618, %v617
        %v643 = vpack.c.b16 %v620, %v619
        %v644 = vpack.c.b16 %v622, %v621
        %v645 = vpack.c.b16 %v624, %v623
        %v646 = vpack.c.b16 %v626, %v625
        %v647 = vpack.c.b16 %v628, %v627
        %v648 = vpack.c.b16 %v630, %v629
        %v649 = vpack.c.b16 %v632, %v631
        %v650 = vpack.c.b16 %v634, %v633
        %667 = vmatprep.subr.bf16.mxu0 0
        %668 = vmatpush1.bf16.msra.mxu0 %v642
        %669 = vmatprep.subr.bf16.mxu0 0
        %670 = vmatpush1.bf16.msra.mxu0 %v641
        %671 = vmatprep.subr.bf16.mxu0 0
        %672 = vmatpush1.bf16.msra.mxu0 %v640
        %673 = vmatprep.subr.bf16.mxu0 0
        %674 = vmatpush1.bf16.msra.mxu0 %v639
        %675 = vmatprep.subr.bf16.mxu0 0
        %676 = vmatpush1.bf16.msra.mxu0 %v638
        %677 = vmatprep.subr.bf16.mxu0 0
        %678 = vmatpush1.bf16.msra.mxu0 %v637
        %679 = vmatprep.subr.bf16.mxu0 0
        %680 = vmatpush1.bf16.msra.mxu0 %v636
        %681 = vmatprep.subr.bf16.mxu0 0
        %682 = vmatpush1.bf16.msra.mxu0 %v635
        %683 = vmatprep.subr.bf16.mxu0 0
        %684 = vmatpush2.bf16.msra.mxu0 %v650
        %685 = vmatprep.subr.bf16.mxu0 0
        %686 = vmatpush2.bf16.msra.mxu0 %v649
        %687 = vmatprep.subr.bf16.mxu0 0
        %688 = vmatpush2.bf16.msra.mxu0 %v648
        %689 = vmatprep.subr.bf16.mxu0 0
        %690 = vmatpush2.bf16.msra.mxu0 %v647
        %691 = vmatprep.subr.bf16.mxu0 0
        %692 = vmatpush2.bf16.msra.mxu0 %v646
        %693 = vmatprep.subr.bf16.mxu0 0
        %694 = vmatpush2.bf16.msra.mxu0 %v645
        %695 = vmatprep.subr.bf16.mxu0 0
        %696 = vmatpush2.bf16.msra.mxu0 %v644
        %697 = vmatprep.subr.bf16.mxu0 0
        %698 = vmatpush2.bf16.msra.mxu0 %v643
        %699 = vmatprep.mubr.bf16.mxu0 %v531
        %700 = vmatmul.mubr.bf16.gmra.mxu0 %v530
        %v701 = vpop.f32.mrf.mxu0
        %v702 = vadd.f32 %v569, %v701
        %v703 = vpop.f32.mrf.mxu0
        %v704 = vpop.f32.mrf.mxu0
        %v705 = vpop.f32.mrf.mxu0
        %706 = vdwg.mxu0
        %v707 = vmul.f32 %v702, 0.5
        %v708 = vadd.f32 %v337, %v707
        %709 = vst [vmem:[%s335] sm:$0xff] %v708
        %s710 = sand.u32 %s186, 1
        %s711 = scalar_lea.sflag [#allocation4], %s710
        %s712 = sand.u32 %s186, 1
        %s713 = smul.addr %s712, 8
        %s714 = scalar_lea.vmem [#allocation10], %s713
        // Predicated region
        $region65: #{tpu_custom_call.1} parent=47 // pred_check
          %p715 = pneg %p196
        $region66: #{tpu_custom_call.1} parent=47 // pred_check_branch
          %717 = sbr.rel (%p715) target = $region68
        $region67: #{tpu_custom_call.1} parent=47 // pred_region
          %s719 = ssub.s32 128, 128
          %720 = vsyncadd %s711, %s719
          %s721 = smul.addr %s26, 128
          %s722 = scalar_lea.hbm %s7, %s721
          %s724 = sshll.u32 %s714, 4
          %s725 = int_to_ptr.vmem [resolvable:$true] %s724
          %727 = dma.vmem_to_hbm [thread:$0]  %s725, 128, %s722, %s711
        $region68: #{tpu_custom_call.1} parent=47 // pred_fallthru
          _
      $region48: #{tpu_custom_call.1} parent=5 // pred_fallthru
        _
      %p728 = scmp.le.s32.totalorder 2, %s21
      // Predicated region
      $region69: #{tpu_custom_call.1} parent=5 // pred_check
        %p729 = pneg %p728
      $region70: #{tpu_custom_call.1} parent=5 // pred_check_branch
        %731 = sbr.rel (%p729) target = $region72
      $region71: #{tpu_custom_call.1} parent=5 // pred_region
        %s732 = ssub.s32 %s21, 2
        // Predicated region
        $region73: #{tpu_custom_call.1} parent=71 // pred_check
          %p733 = pneg %p202
        $region74: #{tpu_custom_call.1} parent=71 // pred_check_branch
          %735 = sbr.rel (%p733) target = $region76
        $region75: #{tpu_custom_call.1} parent=71 // pred_region
          %s736 = sand.u32 %s187, 1
          %s737 = scalar_lea.sflag [#allocation4], %s736
          %s738 = sand.u32 %s187, 1
          %s739 = smul.addr %s738, 8
          %s740 = scalar_lea.vmem [#allocation10], %s739
          %741 = dma.done %s737, 128
        $region76: #{tpu_custom_call.1} parent=71 // pred_fallthru
          _
      $region72: #{tpu_custom_call.1} parent=5 // pred_fallthru
        _
    $region6: #{tpu_custom_call.1} parent=1 // loop_footer
      %s25 = sadd.s32 1, %s21
    $region7: #{tpu_custom_call.1} parent=1 // loop_footer_branch
      %20 = sbr.rel target = $region3
    $region8: #{tpu_custom_call.1} parent=1 // loop_exit
      _
    %742 = vsyncpa [#allocation3], 1
    %s743 = scalar_lea.sflag [#allocation3], 1
    %744 = vsyncpa %s743, 1
    %745 = vsyncpa [#allocation6], 1
    %746 = vsyncpa [#allocation9], 1
    %747 = vsyncpa [#allocation4], 1
    %s748 = scalar_lea.sflag [#allocation4], 1
    %749 = vsyncpa %s748, 1

</llo_original>
